<compile_context>
chip_gen: v5e
topology: v5e:2x2
jax: 0.10.0
libtpu: 0.0.40
codegen_flags: <defaults>
</compile_context>

<pallas_src>
import functools
import numpy as np
import jax
import jax.numpy as jnp
from jax import lax
from jax.experimental import pallas as pl
from jax.experimental.pallas import tpu as pltpu


# ----------------------------------------------------------------------------
# Pallas kernel: all matmuls / reductions / elementwise math of VAMPS.forward
# ----------------------------------------------------------------------------
def _vamps_kernel(*refs, norm, renorm, has_chi, activation):
    if has_chi:
        s_kernel_ref, v_ref, cslab_ref, chi_ref, out_ref, probs_ref = refs
    else:
        s_kernel_ref, v_ref, cslab_ref, out_ref = refs

    M = s_kernel_ref.shape[0]

    sk = s_kernel_ref[...]                       # (M, M)
    kernel_w = activation(sk)                    # elementwise activation (default exp)
    w1 = kernel_w + kernel_w.T                   # (M, M), exactly symmetric

    # v as a lane-dense (1, M) row.  w1 is symmetric, so v_row @ w1 == (w1 @ v)^T.
    v_row = v_ref[...]                           # (1, M)
    w_norm = jnp.dot(v_row, w1, preferred_element_type=jnp.float32)       # (1, M)
    if renorm:
        inv_max = pl.reciprocal(jnp.max(jnp.abs(w_norm), keepdims=True),
                                approx=False)                             # (1, 1)
        w1 = w1 * inv_max
        w_norm = jnp.dot(v_row, w1, preferred_element_type=jnp.float32)

    # w2 = (1 - w_norm) / v : reciprocal + multiply (EUP path, frees the VALU)
    w2 = (1.0 - w_norm) * pl.reciprocal(v_row, approx=False)              # (1, M)

    row = lax.broadcasted_iota(jnp.int32, (M, M), 0)
    col = lax.broadcasted_iota(jnp.int32, (M, M), 1)
    S = w1 + jnp.where(row == col, w2, 0.0)      # w1 + diag(w2); still symmetric

    # One fused MXU pass over the packed [C00 | C11 | C01 | sigma] slab (M, 4M).
    # S^T == S exactly, so no transposed contractions are needed anywhere.
    P = jnp.dot(S, cslab_ref[...], preferred_element_type=jnp.float32)    # (M, 4M)
    A = P[:, 0:M]            # S @ C00
    Bm = P[:, M:2 * M]       # S @ C11
    G = P[:, 2 * M:3 * M]    # S @ C01
    K = P[:, 3 * M:4 * M]    # S @ sigma

    # vamp_e = S^T @ C00 @ S @ C11 - 2 * S^T @ C01 == (S@C00) @ (S@C11) - 2*(S@C01)
    vamp_e = jnp.dot(A, Bm, preferred_element_type=jnp.float32) - 2.0 * G

    # Single lane-dense (M, 4M) output slab -> unmasked 128-wide stores, one writeback DMA.
    # 4th block is filler (ignored by the wrapper); repeating K keeps it cheap.
    out_ref[...] = jnp.concatenate([vamp_e, K, S, K], axis=1)

    if has_chi:
        chi = chi_ref[...]                       # (B, 3M) = [chi_t | chi_tau | u_bcast]
        chi_t = chi[:, 0:M]
        chi_tau = chi[:, M:2 * M]
        u_b = chi[:, 2 * M:3 * M]
        # chi_tau @ S^T == chi_tau @ S (symmetric): MXU-native last-dim contraction.
        cs = jnp.dot(chi_tau, S, preferred_element_type=jnp.float32)      # (B, M)
        # chi_tau @ u^T as a VPU multiply + lane reduce (avoid a tiny MXU matvec).
        cu = jnp.sum(chi_tau * u_b, axis=1, keepdims=True)                # (B, 1)
        q = norm * cs * cu                                                # (B, M)
        probs_ref[...] = jnp.sum(chi_t * q, axis=1, keepdims=True)        # (B, 1)


# ----------------------------------------------------------------------------
# Wrapper (glue: batch-index selection, operand packing, branch dispatch)
# ----------------------------------------------------------------------------
def vamps_forward(x, s_kernel, *, renorm=False, activation=jnp.exp):
    """x is [v, C00, C11, C01, sigma] or [chi_t, chi_tau, u, v, C00, C11, C01, sigma]."""
    if len(x) == 5:
        v, C00, C11, C01, sigma = x
        chi_t = chi_tau = u = None
    else:
        chi_t, chi_tau, u, v, C00, C11, C01, sigma = x

    n_batch = v.shape[0]
    M = s_kernel.shape[0]
    norm = 1.0 / n_batch
    has_chi = chi_t is not None
    f32 = jnp.float32

    v_row = v[0].astype(f32).reshape(1, M)                                 # (1, M)
    # Pack the four (M, M) statistics into one lane-dense (M, 4M) slab: one input DMA
    # and a single fused S @ slab MXU pass inside the kernel.
    c_slab = jnp.concatenate(
        [C00[0].astype(f32), C11[0].astype(f32),
         C01[0].astype(f32), sigma[0].astype(f32)], axis=1)                # (M, 4M)

    in_arrays = [s_kernel.astype(f32), v_row, c_slab]
    out_shape = [jax.ShapeDtypeStruct((M, 4 * M), f32)]

    if has_chi:
        chi_slab = jnp.concatenate(
            [chi_t.astype(f32), chi_tau.astype(f32),
             jnp.broadcast_to(u[0].astype(f32), (n_batch, M))], axis=1)    # (B, 3M)
        in_arrays.append(chi_slab)
        out_shape.append(jax.ShapeDtypeStruct((n_batch, 1), f32))

    kernel = functools.partial(_vamps_kernel, norm=norm, renorm=renorm,
                               has_chi=has_chi, activation=activation)

    vmem = pltpu.MemorySpace.VMEM
    outs = pl.pallas_call(
        kernel,
        in_specs=[pl.BlockSpec(memory_space=vmem)] * len(in_arrays),
        out_specs=tuple(pl.BlockSpec(memory_space=vmem) for _ in out_shape),
        out_shape=tuple(out_shape),
    )(*in_arrays)

    if has_chi:
        slab, probs2d = outs
        probs = probs2d[:, 0]                                              # (B,)
    else:
        (slab,) = outs
        probs = jnp.zeros((n_batch, M), f32)                               # torch branch

    vamp_e = slab[:, 0:M]
    K = slab[:, M:2 * M]
    S = slab[:, 2 * M:3 * M]

    # broadcast_to: identical values/shape to torch.tile, but fuses under a consumer jit
    # instead of writing 3*B*M*M f32 back to HBM in a separate op.
    vamp_e_tile = jnp.broadcast_to(vamp_e[None], (n_batch, M, M))
    K_tile = jnp.broadcast_to(K[None], (n_batch, M, M))
    S_tile = jnp.broadcast_to(S[None], (n_batch, M, M))
    return [vamp_e_tile, K_tile, probs, S_tile]


# ----------------------------------------------------------------------------
# Pure-JAX reference (mirrors the PyTorch forward)
# ----------------------------------------------------------------------------
def vamps_reference(x, s_kernel, renorm=False):
    if len(x) == 5:
        v, C00, C11, C01, sigma = x
        chi_t = chi_tau = u = None
    else:
        chi_t, chi_tau, u, v, C00, C11, C01, sigma = x
    n_batch = v.shape[0]
    M = s_kernel.shape[0]
    norm = 1.0 / n_batch
    C00, C11, C01 = C00[0], C11[0], C01[0]
    sigma0, v0 = sigma[0], v[0]
    P = jax.lax.Precision.HIGHEST
    kernel_w = jnp.exp(s_kernel)
    w1 = kernel_w + kernel_w.T
    w_norm = jnp.matmul(w1, v0, precision=P)
    if renorm:
        w1 = w1 / jnp.max(jnp.abs(w_norm))
        w_norm = jnp.matmul(w1, v0, precision=P)
    w2 = (1.0 - jnp.squeeze(w_norm)) / jnp.squeeze(v0)
    S = w1 + jnp.diag(w2)
    St = S.T
    if chi_t is not None:
        u0 = u[0]
        q = (norm * jnp.matmul(S, chi_tau.T, precision=P).T
             * jnp.matmul(chi_tau, u0.T, precision=P))
        probs = jnp.sum(chi_t * q, axis=1)
    else:
        probs = jnp.zeros((n_batch, M), jnp.float32)
    K = jnp.matmul(S, sigma0, precision=P)
    vamp_e = (jnp.matmul(jnp.matmul(jnp.matmul(St, C00, precision=P), S, precision=P),
                         C11, precision=P)
              - 2.0 * jnp.matmul(St, C01, precision=P))
    return [jnp.tile(vamp_e[None], (n_batch, 1, 1)),
            jnp.tile(K[None], (n_batch, 1, 1)),
            probs,
            jnp.tile(S[None], (n_batch, 1, 1))]


def _check(tag, out, ref):
    names = ["vamp_e_tile", "K_tile", "probs", "S_tile"]
    for name, o, r in zip(names, out, ref):
        assert o.shape == r.shape, f"{tag}/{name}: shape {o.shape} vs {r.shape}"
        if not np.allclose(np.asarray(o), np.asarray(r), rtol=5e-3, atol=5e-2):
            err = np.max(np.abs(np.asarray(o) - np.asarray(r)))
            raise AssertionError(f"{tag}/{name} mismatch: max abs err {err}")


if __name__ == "__main__":
    B, M = 8, 32     # batch, units

    key = jax.random.PRNGKey(0)
    k1, k2, k3, k4, k5, k6, k7, k8 = jax.random.split(key, 8)

    # Parameter init exactly as in __init__: 0.1 * ones((M, M))
    s_kernel = 0.1 * jnp.ones((M, M), dtype=jnp.float32)

    chi_t   = jax.random.uniform(k1, (B, M), jnp.float32)
    chi_tau = jax.random.uniform(k2, (B, M), jnp.float32)
    u       = jax.random.uniform(k3, (B, 1, M), jnp.float32, 0.1, 1.0)
    v       = jax.random.uniform(k4, (B, M, 1), jnp.float32, 0.5, 1.5)
    C00     = jax.random.uniform(k5, (B, M, M), jnp.float32)
    C11     = jax.random.uniform(k6, (B, M, M), jnp.float32)
    C01     = jax.random.uniform(k7, (B, M, M), jnp.float32)
    sigma   = jax.random.uniform(k8, (B, M, M), jnp.float32)

    x8 = [chi_t, chi_tau, u, v, C00, C11, C01, sigma]
    x5 = [v, C00, C11, C01, sigma]

    # 8-input branch (with chi), renorm=False
    out = jax.block_until_ready(vamps_forward(x8, s_kernel, renorm=False))
    _check("chi", out, vamps_reference(x8, s_kernel, renorm=False))

    # 8-input branch, renorm=True (exercises the reciprocal/renorm path)
    out_rn = jax.block_until_ready(vamps_forward(x8, s_kernel, renorm=True))
    _check("chi_renorm", out_rn, vamps_reference(x8, s_kernel, renorm=True))

    # 5-input branch (no chi): probs block skipped entirely inside the kernel
    out5 = jax.block_until_ready(vamps_forward(x5, s_kernel, renorm=False))
    _check("nochi", out5, vamps_reference(x5, s_kernel, renorm=False))

    print("KERNEL_OK")
</pallas_src>

<mosaic_0001>
module attributes {stable_mosaic.version = 11 : i64} {
  func.func @_vamps_kernel(%arg0: memref<32x32xf32, #tpu.memory_space<vmem>>, %arg1: memref<1x32xf32, #tpu.memory_space<vmem>>, %arg2: memref<32x128xf32, #tpu.memory_space<vmem>>, %arg3: memref<8x96xf32, #tpu.memory_space<vmem>>, %arg4: memref<32x128xf32, #tpu.memory_space<vmem>>, %arg5: memref<8x1xf32, #tpu.memory_space<vmem>>) attributes {dimension_semantics = [], scalar_prefetch = 0 : i64, scratch_operands = 0 : i64, tpu.core_type = #tpu.core_type<tc>} {
    %c0 = arith.constant 0 : index
    %c0_0 = arith.constant 0 : index
    %0 = vector.load %arg0[%c0, %c0_0] : memref<32x32xf32, #tpu.memory_space<vmem>>, vector<32x32xf32>
    %1 = math.exp %0 : vector<32x32xf32>
    %2 = tpu.transpose %1, [1, 0] : vector<32x32xf32> -> vector<32x32xf32>
    %3 = arith.addf %1, %2 : vector<32x32xf32>
    %c0_1 = arith.constant 0 : index
    %c0_2 = arith.constant 0 : index
    %4 = vector.load %arg1[%c0_1, %c0_2] : memref<1x32xf32, #tpu.memory_space<vmem>>, vector<1x32xf32>
    %cst = arith.constant dense<0.000000e+00> : vector<1x32xf32>
    %5 = tpu.matmul %4, %3, %cst {dimension_numbers = #tpu.dot_dimension_numbers<[1], [0], [0], [1], [0, 0, 1, 1], [], []>} : vector<1x32xf32>, vector<32x32xf32>, vector<1x32xf32> -> vector<1x32xf32>
    %cst_3 = arith.constant 1.000000e+00 : f32
    %6 = vector.broadcast %cst_3 : f32 to vector<1x32xf32>
    %7 = arith.subf %6, %5 : vector<1x32xf32>
    %8 = tpu.reciprocal %4 : vector<1x32xf32> -> vector<1x32xf32>
    %9 = arith.mulf %7, %8 : vector<1x32xf32>
    %10 = tpu.iota {dimensions = array<i32: 0>} : vector<32x32xi32>
    %11 = tpu.iota {dimensions = array<i32: 1>} : vector<32x32xi32>
    %12 = arith.cmpi eq, %10, %11 : vector<32x32xi32>
    %cst_4 = arith.constant 0.000000e+00 : f32
    %13 = vector.shape_cast %9 : vector<1x32xf32> to vector<1x32xf32>
    %14 = vector.broadcast %13 : vector<1x32xf32> to vector<32x32xf32>
    %15 = vector.broadcast %cst_4 : f32 to vector<32x32xf32>
    %16 = arith.select %12, %14, %15 : vector<32x32xi1>, vector<32x32xf32>
    %17 = arith.addf %3, %16 : vector<32x32xf32>
    %c0_5 = arith.constant 0 : index
    %c0_6 = arith.constant 0 : index
    %18 = vector.load %arg2[%c0_5, %c0_6] : memref<32x128xf32, #tpu.memory_space<vmem>>, vector<32x128xf32>
    %cst_7 = arith.constant dense<0.000000e+00> : vector<32x128xf32>
    %19 = tpu.matmul %17, %18, %cst_7 {dimension_numbers = #tpu.dot_dimension_numbers<[1], [0], [0], [1], [0, 0, 1, 1], [], []>} : vector<32x32xf32>, vector<32x128xf32>, vector<32x128xf32> -> vector<32x128xf32>
    %20 = vector.extract_strided_slice %19 {offsets = [0, 0], sizes = [32, 32], strides = [1, 1]} : vector<32x128xf32> to vector<32x32xf32>
    %21 = vector.extract_strided_slice %19 {offsets = [0, 32], sizes = [32, 32], strides = [1, 1]} : vector<32x128xf32> to vector<32x32xf32>
    %22 = vector.extract_strided_slice %19 {offsets = [0, 64], sizes = [32, 32], strides = [1, 1]} : vector<32x128xf32> to vector<32x32xf32>
    %23 = vector.extract_strided_slice %19 {offsets = [0, 96], sizes = [32, 32], strides = [1, 1]} : vector<32x128xf32> to vector<32x32xf32>
    %cst_8 = arith.constant dense<0.000000e+00> : vector<32x32xf32>
    %24 = tpu.matmul %20, %21, %cst_8 {dimension_numbers = #tpu.dot_dimension_numbers<[1], [0], [0], [1], [0, 0, 1, 1], [], []>} : vector<32x32xf32>, vector<32x32xf32>, vector<32x32xf32> -> vector<32x32xf32>
    %cst_9 = arith.constant 2.000000e+00 : f32
    %25 = vector.broadcast %cst_9 : f32 to vector<32x32xf32>
    %26 = arith.mulf %25, %22 : vector<32x32xf32>
    %27 = arith.subf %24, %26 : vector<32x32xf32>
    %28 = tpu.concatenate %27, %23, %17, %23 in 1 : vector<32x32xf32>, vector<32x32xf32>, vector<32x32xf32>, vector<32x32xf32> -> vector<32x128xf32>
    %c0_10 = arith.constant 0 : index
    %c0_11 = arith.constant 0 : index
    %29 = vector.load %arg4[%c0_10, %c0_11] : memref<32x128xf32, #tpu.memory_space<vmem>>, vector<32x128xf32>
    tpu.vector_store %arg4[%c0_10, %c0_11], %28 {strides = array<i32>} : memref<32x128xf32, #tpu.memory_space<vmem>>, vector<32x128xf32>,
    %c0_12 = arith.constant 0 : index
    %c0_13 = arith.constant 0 : index
    %30 = vector.load %arg3[%c0_12, %c0_13] : memref<8x96xf32, #tpu.memory_space<vmem>>, vector<8x96xf32>
    %31 = vector.extract_strided_slice %30 {offsets = [0, 0], sizes = [8, 32], strides = [1, 1]} : vector<8x96xf32> to vector<8x32xf32>
    %32 = vector.extract_strided_slice %30 {offsets = [0, 32], sizes = [8, 32], strides = [1, 1]} : vector<8x96xf32> to vector<8x32xf32>
    %33 = vector.extract_strided_slice %30 {offsets = [0, 64], sizes = [8, 32], strides = [1, 1]} : vector<8x96xf32> to vector<8x32xf32>
    %cst_14 = arith.constant dense<0.000000e+00> : vector<8x32xf32>
    %34 = tpu.matmul %32, %17, %cst_14 {dimension_numbers = #tpu.dot_dimension_numbers<[1], [0], [0], [1], [0, 0, 1, 1], [], []>} : vector<8x32xf32>, vector<32x32xf32>, vector<8x32xf32> -> vector<8x32xf32>
    %35 = arith.mulf %32, %33 : vector<8x32xf32>
    %cst_15 = arith.constant dense<0.000000e+00> : vector<8xf32>
    %36 = vector.multi_reduction <add>, %35, %cst_15 [1] : vector<8x32xf32> to vector<8xf32>
    %37 = vector.shape_cast %36 : vector<8xf32> to vector<8x1xf32>
    %cst_16 = arith.constant 1.250000e-01 : f32
    %38 = vector.broadcast %cst_16 : f32 to vector<8x32xf32>
    %39 = arith.mulf %38, %34 : vector<8x32xf32>
    %40 = vector.broadcast %37 : vector<8x1xf32> to vector<8x32xf32>
    %41 = arith.mulf %39, %40 : vector<8x32xf32>
    %42 = arith.mulf %31, %41 : vector<8x32xf32>
    %cst_17 = arith.constant dense<0.000000e+00> : vector<8xf32>
    %43 = vector.multi_reduction <add>, %42, %cst_17 [1] : vector<8x32xf32> to vector<8xf32>
    %44 = vector.shape_cast %43 : vector<8xf32> to vector<8x1xf32>
    %c0_18 = arith.constant 0 : index
    %c0_19 = arith.constant 0 : index
    %45 = vector.load %arg5[%c0_18, %c0_19] : memref<8x1xf32, #tpu.memory_space<vmem>>, vector<8x1xf32>
    tpu.vector_store %arg5[%c0_18, %c0_19], %44 {strides = array<i32>} : memref<8x1xf32, #tpu.memory_space<vmem>>, vector<8x1xf32>,
    return
  }
}

</mosaic_0001>

<llo_original>
// kernel: tpu_custom_call.1
$region0: #{tpu_custom_call.1}
  #allocation0 [shape = 'u32[]', space=smem, size = 0x4, offset = 0x4, fixed_abs, tag = 'smem constant byte address 0x4 - core index']
  #allocation1 [shape = 'u32[72,128]{1,0:T(1,128)}', space=vmem, size = 0x9000, scoped, tag = 'internal scratch']
  %s0 = inlined_call_operand.hbm [shape: f32[32,32], index: 0, kind: input, shape index: {}]
  %s1 = inlined_call_operand.hbm [shape: f32[1,32], index: 1, kind: input, shape index: {}]
  %s2 = inlined_call_operand.hbm [shape: f32[32,128], index: 2, kind: input, shape index: {}]
  %s3 = inlined_call_operand.hbm [shape: f32[8,96], index: 3, kind: input, shape index: {}]
  %s4 = inlined_call_operand.hbm [shape: f32[32,128], index: 4, kind: output, shape index: {0}]
  %s5 = inlined_call_operand.vmem [shape: f32[8,1], index: 5, kind: output, shape index: {1}]
  %6 = xla_tuple %s4, %s5
  %s7 = sld [smem:[#allocation0]]
  $region50: #{tpu_custom_call.1} parent=0
    _
  %s9 = ssub.s32 1, %s7
  %s10 = scalar_select 0, %s9, %s7
  $region1: #{tpu_custom_call.1} parent=0
    #allocation2 [shape = 'u8[16384]{0}', space=vmem, size = 0x4000, scoped, tag = 'input window, operand 0, single buffered']
    #allocation3 [shape = 's32[1]{0}', space=sflag, size = 0x4, scoped, tag = 'scoped memory for tpu_custom_call.1']
    #allocation4 [shape = 's32[1]{0}', space=sflag, size = 0x4, scoped, tag = 'scoped memory for tpu_custom_call.1']
    #allocation5 [shape = 'u8[512]{0}', space=vmem, size = 0x400, scoped, tag = 'input window, operand 1, single buffered']
    #allocation6 [shape = 's32[1]{0}', space=sflag, size = 0x4, scoped, tag = 'scoped memory for tpu_custom_call.1']
    #allocation7 [shape = 'u8[16384]{0}', space=vmem, size = 0x4000, scoped, tag = 'input window, operand 2, single buffered']
    #allocation8 [shape = 'u8[4096]{0}', space=vmem, size = 0x1000, scoped, tag = 'input window, operand 3, single buffered']
    #allocation9 [shape = 's32[1]{0}', space=sflag, size = 0x4, scoped, tag = 'scoped memory for tpu_custom_call.1']
    #allocation10 [shape = 'u8[16384]{0}', space=vmem, size = 0x4000, scoped, tag = 'output window, operand 0, single buffered']
    %11 = vsyncpa [#allocation3], 0
    %12 = vsyncpa [#allocation6], 0
    %13 = vsyncpa [#allocation9], 0
    %14 = vsyncpa [#allocation4], 0
    // Predicated region
    $region2: #{tpu_custom_call.1} parent=1 // pred_check
      _
    $region3: #{tpu_custom_call.1} parent=1 // pred_check_branch
      %16 = sbr.rel (0) target = $region5
    $region4: #{tpu_custom_call.1} parent=1 // pred_region
      %18 = vsyncadd [#allocation3], 0
      %s19 = sshll.u32 %s0, 4
      %s20 = int_to_ptr.hbm [resolvable:$true] %s19
      %s21 = sshll.u32 [#allocation2], 4
      %s22 = int_to_ptr.vmem [resolvable:$true] %s21
      %27 = dma.hbm_to_vmem [thread:$0]  %s20, 512, %s22, [#allocation3], 128, 128, 8
    $region5: #{tpu_custom_call.1} parent=1 // pred_fallthru
      _
    // Predicated region
    $region6: #{tpu_custom_call.1} parent=1 // pred_check
      _
    $region7: #{tpu_custom_call.1} parent=1 // pred_check_branch
      %29 = sbr.rel (0) target = $region9
    $region8: #{tpu_custom_call.1} parent=1 // pred_region
      %31 = vsyncadd [#allocation6], 0
      %s33 = sshll.u32 %s1, 4
      %s34 = int_to_ptr.hbm [resolvable:$true] %s33
      %s35 = sshll.u32 [#allocation5], 4
      %s36 = int_to_ptr.vmem [resolvable:$true] %s35
      %38 = dma.hbm_to_vmem [thread:$0]  %s34, 16, %s36, [#allocation6]
    $region9: #{tpu_custom_call.1} parent=1 // pred_fallthru
      _
    // Predicated region
    $region10: #{tpu_custom_call.1} parent=1 // pred_check
      _
    $region11: #{tpu_custom_call.1} parent=1 // pred_check_branch
      %40 = sbr.rel (0) target = $region13
    $region12: #{tpu_custom_call.1} parent=1 // pred_region
      %42 = vsyncadd [#allocation6], 0
      %s43 = sshll.u32 %s2, 4
      %s44 = int_to_ptr.hbm [resolvable:$true] %s43
      %s45 = sshll.u32 [#allocation7], 4
      %s46 = int_to_ptr.vmem [resolvable:$true] %s45
      %51 = dma.hbm_to_vmem [thread:$0]  %s44, 512, %s46, [#allocation6], 128, 128, 8
    $region13: #{tpu_custom_call.1} parent=1 // pred_fallthru
      _
    // Predicated region
    $region14: #{tpu_custom_call.1} parent=1 // pred_check
      _
    $region15: #{tpu_custom_call.1} parent=1 // pred_check_branch
      %53 = sbr.rel (0) target = $region17
    $region16: #{tpu_custom_call.1} parent=1 // pred_region
      %55 = vsyncadd [#allocation9], 0
      %s57 = sshll.u32 %s3, 4
      %s58 = int_to_ptr.hbm [resolvable:$true] %s57
      %s59 = sshll.u32 [#allocation8], 4
      %s60 = int_to_ptr.vmem [resolvable:$true] %s59
      %62 = dma.hbm_to_vmem [thread:$0]  %s58, 128, %s60, [#allocation9]
    $region17: #{tpu_custom_call.1} parent=1 // pred_fallthru
      _
    // Predicated region
    $region18: #{tpu_custom_call.1} parent=1 // pred_check
      _
    $region19: #{tpu_custom_call.1} parent=1 // pred_check_branch
      %64 = sbr.rel (0) target = $region21
    $region20: #{tpu_custom_call.1} parent=1 // pred_region
      %66 = dma.done [#allocation3], 512
    $region21: #{tpu_custom_call.1} parent=1 // pred_fallthru
      _
    // Predicated region
    $region22: #{tpu_custom_call.1} parent=1 // pred_check
      _
    $region23: #{tpu_custom_call.1} parent=1 // pred_check_branch
      %68 = sbr.rel (0) target = $region25
    $region24: #{tpu_custom_call.1} parent=1 // pred_region
      %70 = dma.done [#allocation6], 16
    $region25: #{tpu_custom_call.1} parent=1 // pred_fallthru
      _
    // Predicated region
    $region26: #{tpu_custom_call.1} parent=1 // pred_check
      _
    $region27: #{tpu_custom_call.1} parent=1 // pred_check_branch
      %72 = sbr.rel (0) target = $region29
    $region28: #{tpu_custom_call.1} parent=1 // pred_region
      %74 = dma.done [#allocation6], 512
    $region29: #{tpu_custom_call.1} parent=1 // pred_fallthru
      _
    // Predicated region
    $region30: #{tpu_custom_call.1} parent=1 // pred_check
      _
    $region31: #{tpu_custom_call.1} parent=1 // pred_check_branch
      %76 = sbr.rel (0) target = $region33
    $region32: #{tpu_custom_call.1} parent=1 // pred_region
      %78 = dma.done [#allocation9], 128
    $region33: #{tpu_custom_call.1} parent=1 // pred_fallthru
      _
    %v79 = vld [vmem:[#allocation2] sm:$0xff]
    %v80 = vld [vmem:[#allocation2 + $0x8] sm:$0xff]
    %v81 = vld [vmem:[#allocation2 + $0x10] sm:$0xff]
    %v82 = vld [vmem:[#allocation2 + $0x18] sm:$0xff]
    %v83 = vmul.f32 %v79, 1.442695
    %v84 = vpow.pop %v83
    %v85 = vmul.f32 %v80, 1.442695
    %v86 = vpow.pop %v85
    %v87 = vmul.f32 %v81, 1.442695
    %v88 = vpow.pop %v87
    %v89 = vmul.f32 %v82, 1.442695
    %v90 = vpow.pop %v89
    %91 = vxpose.xlu0.b32.start [1/16] %v84, 128
    %92 = vxpose.xlu0.b32.cont [2/16] %v86, 128
    %93 = vxpose.xlu0.b32.cont [3/16] %v88, 128
    %94 = vxpose.xlu0.b32.cont [4/16] %v90, 128
    %95 = vxpose.xlu0.b32.cont [5/16] 0.0, 128
    %96 = vxpose.xlu0.b32.cont [6/16] 0.0, 128
    %97 = vxpose.xlu0.b32.cont [7/16] 0.0, 128
    %98 = vxpose.xlu0.b32.cont [8/16] 0.0, 128
    %99 = vxpose.xlu0.b32.cont [9/16] 0.0, 128
    %100 = vxpose.xlu0.b32.cont [10/16] 0.0, 128
    %101 = vxpose.xlu0.b32.cont [11/16] 0.0, 128
    %102 = vxpose.xlu0.b32.cont [12/16] 0.0, 128
    %103 = vxpose.xlu0.b32.cont [13/16] 0.0, 128
    %104 = vxpose.xlu0.b32.cont [14/16] 0.0, 128
    %105 = vxpose.xlu0.b32.cont [15/16] 0.0, 128
    %106 = vxpose.xlu0.b32.end [16/16] 0.0, 128
    %v107 = vpop.trf.xlu0
    %v108 = vpop.trf.xlu0
    %v109 = vpop.trf.xlu0
    %v110 = vpop.trf.xlu0
    %v111 = vpop.trf.xlu0
    %v112 = vpop.trf.xlu0
    %v113 = vpop.trf.xlu0
    %v114 = vpop.trf.xlu0
    %v115 = vpop.trf.xlu0
    %v116 = vpop.trf.xlu0
    %v117 = vpop.trf.xlu0
    %v118 = vpop.trf.xlu0
    %v119 = vpop.trf.xlu0
    %v120 = vpop.trf.xlu0
    %v121 = vpop.trf.xlu0
    %v122 = vpop.trf.xlu0
    %v123 = vadd.f32 %v84, %v107
    %v124 = vadd.f32 %v86, %v108
    %v125 = vadd.f32 %v88, %v109
    %v126 = vadd.f32 %v90, %v110
    %v127 = vld [vmem:[#allocation5] sm:$0x1]
    %vm128 = vcmask 261120
    %v130 = vsel %vm128, %v127, 0
    %132 = vmatpush.msra.mxu0 0.0
    %133 = vmatpush.msra.mxu0 0.0
    %134 = vmatpush.msra.mxu0 0.0
    %135 = vmatpush.msra.mxu0 0.0
    %136 = vmatpush.msra.mxu0 0.0
    %137 = vmatpush.msra.mxu0 0.0
    %138 = vmatpush.msra.mxu0 0.0
    %139 = vmatpush.msra.mxu0 0.0
    %140 = vmatpush.msra.mxu0 0.0
    %141 = vmatpush.msra.mxu0 0.0
    %142 = vmatpush.msra.mxu0 0.0
    %143 = vmatpush.msra.mxu0 0.0
    %144 = vmatpush.msra.mxu0 %v126
    %145 = vmatpush.msra.mxu0 %v125
    %146 = vmatpush.msra.mxu0 %v124
    %147 = vmatpush.msra.mxu0 %v123
    %148 = vmatmul.f32.gmra.mxu0 %v130
    %v149 = vpop.f32.mrf.mxu0
    %v150 = vadd.f32 0.0, %v149
    %151 = vdwg.mxu0
    %v152 = vsub.f32 1.0, %v150
    %v153 = vrcp.pop %v127
    %v154 = vmul.f32 %v127, %v153
    %v155 = vsub.f32 1.0, %v154
    %v156 = vmul.f32 %v153, %v155
    %v157 = vadd.f32 %v153, %v156
    %vm158 = vweird.f32 %v127
    %vm159 = vweird.f32 %v153
    %vm160 = vmor %vm158, %vm159
    %v161 = vsel %vm160, %v153, %v157
    %v162 = vand.u32 2147483647, %v127
    %vm163 = vcmp.eq.f32.partialorder %v162, 8.507059e+37
    %v164 = vand.u32 %v127, 2147483648
    %v165 = vor.u32 1.1754944e-38, %v164
    %v166 = vsel %vm163, %v165, %v161
    %v167 = vmul.f32 %v152, %v166
    %v168 = vlaneseq
    %v169 = vshrl.u32 %v168, 7
    %v170 = vadd.s32 %v169, 8
    %v171 = vadd.s32 %v169, 16
    %v172 = vadd.s32 %v169, 24
    %v173 = vlaneseq
    %v174 = vand.u32 %v173, 127
    %vm175 = vcmp.eq.s32.totalorder %v169, %v174
    %vm176 = vcmp.eq.s32.totalorder %v170, %v174
    %vm177 = vcmp.eq.s32.totalorder %v171, %v174
    %vm178 = vcmp.eq.s32.totalorder %v172, %v174
    %v179 = vperm.slane %v167, 0
    %v180 = vsel %vm175, %v179, 0.0
    %v181 = vsel %vm176, %v179, 0.0
    %v182 = vsel %vm177, %v179, 0.0
    %v183 = vsel %vm178, %v179, 0.0
    %v184 = vadd.f32 %v123, %v180
    %v185 = vadd.f32 %v124, %v181
    %v186 = vadd.f32 %v125, %v182
    %v187 = vadd.f32 %v126, %v183
    %v188 = vld [vmem:[#allocation7] sm:$0xff]
    %v189 = vld [vmem:[#allocation7 + $0x8] sm:$0xff]
    %v190 = vld [vmem:[#allocation7 + $0x10] sm:$0xff]
    %v191 = vld [vmem:[#allocation7 + $0x18] sm:$0xff]
    %v193 = vsel %vm128, %v184, 0
    %v196 = vsel %vm128, %v185, 0
    %v199 = vsel %vm128, %v186, 0
    %v202 = vsel %vm128, %v187, 0
    %204 = vmatpush.msra.mxu0 0.0
    %205 = vmatpush.msra.mxu0 0.0
    %206 = vmatpush.msra.mxu0 0.0
    %207 = vmatpush.msra.mxu0 0.0
    %208 = vmatpush.msra.mxu0 0.0
    %209 = vmatpush.msra.mxu0 0.0
    %210 = vmatpush.msra.mxu0 0.0
    %211 = vmatpush.msra.mxu0 0.0
    %212 = vmatpush.msra.mxu0 0.0
    %213 = vmatpush.msra.mxu0 0.0
    %214 = vmatpush.msra.mxu0 0.0
    %215 = vmatpush.msra.mxu0 0.0
    %216 = vmatpush.msra.mxu0 %v191
    %217 = vmatpush.msra.mxu0 %v190
    %218 = vmatpush.msra.mxu0 %v189
    %219 = vmatpush.msra.mxu0 %v188
    %220 = vmatmul.f32.gmra.mxu0 %v193
    %v221 = vpop.f32.mrf.mxu0
    %v222 = vadd.f32 0.0, %v221
    %223 = vmatmul.f32.gmra.mxu0 %v196
    %v224 = vpop.f32.mrf.mxu0
    %v225 = vadd.f32 0.0, %v224
    %226 = vmatmul.f32.gmra.mxu0 %v199
    %v227 = vpop.f32.mrf.mxu0
    %v228 = vadd.f32 0.0, %v227
    %229 = vmatmul.f32.gmra.mxu0 %v202
    %v230 = vpop.f32.mrf.mxu0
    %v231 = vadd.f32 0.0, %v230
    %232 = vdwg.mxu0
    %237 = vrot.lane.b32.xlu0 %v222, 96
    %v238 = vpop.permute.xlu0 %237
    %239 = vrot.lane.b32.xlu0 %v225, 96
    %v240 = vpop.permute.xlu0 %239
    %241 = vrot.lane.b32.xlu0 %v228, 96
    %v242 = vpop.permute.xlu0 %241
    %243 = vrot.lane.b32.xlu0 %v231, 96
    %v244 = vpop.permute.xlu0 %243
    %v249 = vsel %vm128, %v222, 0
    %v251 = vsel %vm128, %v225, 0
    %v253 = vsel %vm128, %v228, 0
    %v255 = vsel %vm128, %v231, 0
    %257 = vmatpush.msra.mxu0 0.0
    %258 = vmatpush.msra.mxu0 0.0
    %259 = vmatpush.msra.mxu0 0.0
    %260 = vmatpush.msra.mxu0 0.0
    %261 = vmatpush.msra.mxu0 0.0
    %262 = vmatpush.msra.mxu0 0.0
    %263 = vmatpush.msra.mxu0 0.0
    %264 = vmatpush.msra.mxu0 0.0
    %265 = vmatpush.msra.mxu0 0.0
    %266 = vmatpush.msra.mxu0 0.0
    %267 = vmatpush.msra.mxu0 0.0
    %268 = vmatpush.msra.mxu0 0.0
    %269 = vmatpush.msra.mxu0 %v244
    %270 = vmatpush.msra.mxu0 %v242
    %271 = vmatpush.msra.mxu0 %v240
    %272 = vmatpush.msra.mxu0 %v238
    %273 = vmatmul.f32.gmra.mxu0 %v249
    %v274 = vpop.f32.mrf.mxu0
    %v275 = vadd.f32 0.0, %v274
    %276 = vmatmul.f32.gmra.mxu0 %v251
    %v277 = vpop.f32.mrf.mxu0
    %v278 = vadd.f32 0.0, %v277
    %279 = vmatmul.f32.gmra.mxu0 %v253
    %v280 = vpop.f32.mrf.mxu0
    %v281 = vadd.f32 0.0, %v280
    %282 = vmatmul.f32.gmra.mxu0 %v255
    %v283 = vpop.f32.mrf.mxu0
    %v284 = vadd.f32 0.0, %v283
    %285 = vdwg.mxu0
    %v286 = vmul.f32 %v222, 2.0
    %v287 = vmul.f32 %v225, 2.0
    %v288 = vmul.f32 %v228, 2.0
    %v289 = vmul.f32 %v231, 2.0
    %294 = vrot.lane.b32.xlu0 %v286, 64
    %v295 = vpop.permute.xlu0 %294
    %296 = vrot.lane.b32.xlu0 %v287, 64
    %v297 = vpop.permute.xlu0 %296
    %298 = vrot.lane.b32.xlu0 %v288, 64
    %v299 = vpop.permute.xlu0 %298
    %300 = vrot.lane.b32.xlu0 %v289, 64
    %v301 = vpop.permute.xlu0 %300
    %v306 = vsub.f32 %v275, %v295
    %v307 = vsub.f32 %v278, %v297
    %v308 = vsub.f32 %v281, %v299
    %v309 = vsub.f32 %v284, %v301
    %310 = vrot.lane.b32.xlu0 %v222, 64
    %v311 = vpop.permute.xlu0 %310
    %312 = vrot.lane.b32.xlu0 %v225, 64
    %v313 = vpop.permute.xlu0 %312
    %314 = vrot.lane.b32.xlu0 %v228, 64
    %v315 = vpop.permute.xlu0 %314
    %316 = vrot.lane.b32.xlu0 %v231, 64
    %v317 = vpop.permute.xlu0 %316
    %322 = vrot.lane.b32.xlu0 %v184, 64
    %v323 = vpop.permute.xlu0 %322
    %324 = vrot.lane.b32.xlu0 %v185, 64
    %v325 = vpop.permute.xlu0 %324
    %326 = vrot.lane.b32.xlu0 %v186, 64
    %v327 = vpop.permute.xlu0 %326
    %328 = vrot.lane.b32.xlu0 %v187, 64
    %v329 = vpop.permute.xlu0 %328
    %v334 = vsel %vm128, %v306, %v311
    %v335 = vsel %vm128, %v307, %v313
    %v336 = vsel %vm128, %v308, %v315
    %v337 = vsel %vm128, %v309, %v317
    %vm338 = vcmask 523264
    %v339 = vsel %vm338, %v334, %v323
    %v340 = vsel %vm338, %v335, %v325
    %v341 = vsel %vm338, %v336, %v327
    %v342 = vsel %vm338, %v337, %v329
    %vm343 = vcmask 785408
    %v344 = vsel %vm343, %v339, %v222
    %v345 = vsel %vm343, %v340, %v225
    %v346 = vsel %vm343, %v341, %v228
    %v347 = vsel %vm343, %v342, %v231
    %348 = vst [vmem:[#allocation10] sm:$0xff] %v344
    %349 = vst [vmem:[#allocation10 + $0x8] sm:$0xff] %v345
    %350 = vst [vmem:[#allocation10 + $0x10] sm:$0xff] %v346
    %351 = vst [vmem:[#allocation10 + $0x18] sm:$0xff] %v347
    %v352 = vld [vmem:[#allocation8] sm:$0xff]
    %354 = vrot.lane.b32.xlu0 %v352, 96
    %v355 = vpop.permute.xlu0 %354
    %v356 = vsel %vm128, %v355, 0
    %358 = vmatpush.msra.mxu0 0.0
    %359 = vmatpush.msra.mxu0 0.0
    %360 = vmatpush.msra.mxu0 0.0
    %361 = vmatpush.msra.mxu0 0.0
    %362 = vmatpush.msra.mxu0 0.0
    %363 = vmatpush.msra.mxu0 0.0
    %364 = vmatpush.msra.mxu0 0.0
    %365 = vmatpush.msra.mxu0 0.0
    %366 = vmatpush.msra.mxu0 0.0
    %367 = vmatpush.msra.mxu0 0.0
    %368 = vmatpush.msra.mxu0 0.0
    %369 = vmatpush.msra.mxu0 0.0
    %370 = vmatpush.msra.mxu0 %v187
    %371 = vmatpush.msra.mxu0 %v186
    %372 = vmatpush.msra.mxu0 %v185
    %373 = vmatpush.msra.mxu0 %v184
    %374 = vmatmul.f32.gmra.mxu0 %v356
    %v375 = vpop.f32.mrf.mxu0
    %v376 = vadd.f32 0.0, %v375
    %377 = vdwg.mxu0
    %v379 = vmul.f32 %v352, %v355
    %381 = vrot.lane.b32.xlu0 %v379, 96
    %v382 = vpop.permute.xlu0 %381
    %v384 = vsel %vm128, %v382, 0.0
    %385 = vadd.xlane.f32.xlu0 %v384
    %v386 = vpop.xlane.xlu0 %385
    %v387 = vmul.f32 %v376, 0.125
    %v388 = vmul.f32 %v387, %v386
    %v389 = vmul.f32 %v352, %v388
    %v390 = vsel %vm128, %v389, 0.0
    %391 = vadd.xlane.f32.xlu0 %v390
    %v392 = vpop.xlane.xlu0 %391
    %vm393 = vcmask 7168
    %394 = vst.msk [vmem:[%s5] sm:$0xff] %vm393, %v392
    // Predicated region
    $region34: #{tpu_custom_call.1} parent=1 // pred_check
      _
    $region35: #{tpu_custom_call.1} parent=1 // pred_check_branch
      %396 = sbr.rel (0) target = $region37
    $region36: #{tpu_custom_call.1} parent=1 // pred_region
      %398 = vsyncadd [#allocation4], 0
      %s399 = sshll.u32 [#allocation10], 4
      %s400 = int_to_ptr.vmem [resolvable:$true] %s399
      %s401 = sshll.u32 %s4, 4
      %s402 = int_to_ptr.hbm [resolvable:$true] %s401
      %407 = dma.vmem_to_hbm [thread:$0]  %s400, 512, %s402, [#allocation4], 128, 128, 8
    $region37: #{tpu_custom_call.1} parent=1 // pred_fallthru
      _
    // Predicated region
    $region38: #{tpu_custom_call.1} parent=1 // pred_check
      _
    $region39: #{tpu_custom_call.1} parent=1 // pred_check_branch
      %409 = sbr.rel (0) target = $region41
    $region40: #{tpu_custom_call.1} parent=1 // pred_region
      _
    $region41: #{tpu_custom_call.1} parent=1 // pred_fallthru
      _
    // Predicated region
    $region42: #{tpu_custom_call.1} parent=1 // pred_check
      _
    $region43: #{tpu_custom_call.1} parent=1 // pred_check_branch
      %411 = sbr.rel (0) target = $region45
    $region44: #{tpu_custom_call.1} parent=1 // pred_region
      %413 = dma.done [#allocation4], 512
    $region45: #{tpu_custom_call.1} parent=1 // pred_fallthru
      _
    // Predicated region
    $region46: #{tpu_custom_call.1} parent=1 // pred_check
      _
    $region47: #{tpu_custom_call.1} parent=1 // pred_check_branch
      %415 = sbr.rel (0) target = $region49
    $region48: #{tpu_custom_call.1} parent=1 // pred_region
      _
    $region49: #{tpu_custom_call.1} parent=1 // pred_fallthru
      _
    %416 = vsyncpa [#allocation3], 1
    %417 = vsyncpa [#allocation6], 1
    %418 = vsyncpa [#allocation9], 1
    %419 = vsyncpa [#allocation4], 1

</llo_original>
